<compile_context>
chip_gen: v7x
topology: tpu7x:2x2x1
jax: 0.10.0
libtpu: 0.0.40
codegen_flags: <defaults>
</compile_context>

<pallas_src>
import functools

import jax
import jax.numpy as jnp
from jax import lax
from jax.experimental import pallas as pl
from jax.experimental.pallas import tpu as pltpu


_VMEM_BUDGET_BYTES = 24 * 1024 * 1024   # leaves headroom inside v7x's 32 MiB scoped default
_VMEM_LIMIT_BYTES = 32 * 1024 * 1024    # raise v5e's 16 MiB default; <= v7x/v6e defaults


def _round_up(x, m):
    return (x + m - 1) // m * m


def _pick_o_tile(o_pad8, q_pad, d_pad):
    """Largest 8-multiple O tile (<=512) whose pipelined blocks fit the VMEM budget."""
    itemsize = 4  # f32
    # Resident per grid step: context (Qp, Dp) double-buffered,
    # three (Dp, Dp) weights single-buffered.
    fixed = 2 * q_pad * d_pad * itemsize + 3 * d_pad * d_pad * itemsize
    # Per output-row cost: query + out (double-buffered, Dp each), attn
    # (double-buffered, Qp), plus in-kernel f32 temporaries
    # (scores/p/w ~ 3*Qp, qg/mix ~ 2*Dp).
    per_row = itemsize * (2 * d_pad + 2 * d_pad + 2 * q_pad + 3 * q_pad + 2 * d_pad)
    avail = _VMEM_BUDGET_BYTES - fixed
    if avail <= per_row * 8:
        # TODO(synk): flash-style Q tiling needed when (Qp, Dp) itself blows VMEM.
        return 8
    to = min(512, (avail // per_row) // 8 * 8)
    return max(8, min(to, o_pad8))


def _attn_kernel(q_ref, c_ref, win_ref, wmix_ref, wq_ref, out_ref, attn_ref,
                 *, q_len, mxu_dtype, approx_recip):
    # q_ref:    (TO, Dp)  query tile for this (batch, O-tile)
    # c_ref:    (Qp, Dp)  context for this batch
    # win_ref:  (Dp, Dp)  linear_in.weight.T          (q @ win == linear_in(q))
    # wmix_ref: (Dp, Dp)  linear_out.weight.T[:D]     (applied to mix)
    # wq_ref:   (Dp, Dp)  linear_out.weight.T[D:]     (applied to linear_in(q))
    q = q_ref[...].astype(mxu_dtype)
    c = c_ref[...].astype(mxu_dtype)

    # linear_in(query)
    qg = jnp.dot(q, win_ref[...].astype(mxu_dtype),
                 preferred_element_type=jnp.float32)                 # (TO, Dp) f32

    # attention scores: contract on D without transposing the context.
    scores = lax.dot_general(
        qg.astype(mxu_dtype), c,
        dimension_numbers=(((1,), (1,)), ((), ())),
        preferred_element_type=jnp.float32)                          # (TO, Qp)

    # Mask padded query_len columns (compile-time branch; no-op when Q == Qp).
    if q_len < scores.shape[-1]:
        col = lax.broadcasted_iota(jnp.int32, scores.shape, 1)
        scores = jnp.where(col < q_len, scores, jnp.finfo(jnp.float32).min)

    # Softmax over query_len, f32 on the VPU (denominator reciprocal on EUP if approx).
    m = jnp.max(scores, axis=-1, keepdims=True)
    p = jnp.exp(scores - m)
    denom = jnp.sum(p, axis=-1, keepdims=True)
    w = p * pl.reciprocal(denom, approx=approx_recip)                # (TO, Qp)

    # mix = attention_weights @ context
    mix = jnp.dot(w.astype(mxu_dtype), c, preferred_element_type=jnp.float32)

    # linear_out([mix, qg]) == mix @ Wout_T[:D] + qg @ Wout_T[D:]
    out = (jnp.dot(mix.astype(mxu_dtype), wmix_ref[...].astype(mxu_dtype),
                   preferred_element_type=jnp.float32)
           + jnp.dot(qg.astype(mxu_dtype), wq_ref[...].astype(mxu_dtype),
                     preferred_element_type=jnp.float32))

    out_ref[...] = jnp.tanh(out).astype(out_ref.dtype)
    attn_ref[...] = w.astype(attn_ref.dtype)


def attention_forward(query, context, linear_in_w, linear_out_w,
                      *, mxu_dtype=jnp.float32, approx_recip=False):
    """Luong 'general' attention forward pass.

    query:        (B, O, D)
    context:      (B, Q, D)
    linear_in_w:  (D, D)    PyTorch nn.Linear weight (out, in), no bias
    linear_out_w: (D, 2D)   PyTorch nn.Linear weight (out, in), no bias
    Returns (output (B, O, D), attention_weights (B, O, Q))
    """
    B, O, D = query.shape
    Q = context.shape[1]
    out_dtype = query.dtype
    f32 = jnp.float32

    # Lane-dense padding: last dims to 128 multiples (no-op if already aligned),
    # O to a sublane/MXU-friendly tile.
    Dp = _round_up(D, 128)
    Qp = _round_up(Q, 128)
    TO = _pick_o_tile(_round_up(O, 8), Qp, Dp)
    Op = _round_up(O, TO)

    # Glue: pre-transpose / split / zero-pad weights so the kernel does plain x @ W.
    win_t = jnp.pad(linear_in_w.T.astype(f32), ((0, Dp - D), (0, Dp - D)))
    wout_t = linear_out_w.T.astype(f32)                               # (2D, D)
    wmix = jnp.pad(wout_t[:D], ((0, Dp - D), (0, Dp - D)))            # applied to mix
    wq = jnp.pad(wout_t[D:], ((0, Dp - D), (0, Dp - D)))              # applied to linear_in(q)

    q_pad = jnp.pad(query, ((0, 0), (0, Op - O), (0, Dp - D)))
    c_pad = jnp.pad(context, ((0, 0), (0, Qp - Q), (0, Dp - D)))

    kernel = functools.partial(_attn_kernel, q_len=Q,
                               mxu_dtype=mxu_dtype, approx_recip=approx_recip)

    def _const_weight_spec():
        # Constant-index blocks don't need double buffering.
        try:
            return pl.BlockSpec((Dp, Dp), lambda b, o: (0, 0),
                                pipeline_mode=pl.Buffered(1))
        except (TypeError, AttributeError):
            return pl.BlockSpec((Dp, Dp), lambda b, o: (0, 0))

    out_p, attn_p = pl.pallas_call(
        kernel,
        out_shape=(jax.ShapeDtypeStruct((B, Op, Dp), out_dtype),
                   jax.ShapeDtypeStruct((B, Op, Qp), out_dtype)),
        grid_spec=pltpu.PrefetchScalarGridSpec(
            num_scalar_prefetch=0,
            grid=(B, Op // TO),
            in_specs=[
                pl.BlockSpec((None, TO, Dp), lambda b, o: (b, o, 0)),  # query tile
                pl.BlockSpec((None, Qp, Dp), lambda b, o: (b, 0, 0)),  # context
                _const_weight_spec(),                                  # win_t
                _const_weight_spec(),                                  # wmix
                _const_weight_spec(),                                  # wq
            ],
            out_specs=[
                pl.BlockSpec((None, TO, Dp), lambda b, o: (b, o, 0)),
                pl.BlockSpec((None, TO, Qp), lambda b, o: (b, o, 0)),
            ],
        ),
        compiler_params=pltpu.CompilerParams(
            dimension_semantics=("parallel", "parallel"),
            vmem_limit_bytes=_VMEM_LIMIT_BYTES),
    )(q_pad, c_pad, win_t, wmix, wq)

    return out_p[:, :O, :D], attn_p[:, :O, :Q]


def attention_reference(query, context, linear_in_w, linear_out_w):
    """Pure-JAX reference mirroring the PyTorch module exactly."""
    q = jnp.einsum("bod,ed->boe", query, linear_in_w)        # linear_in
    scores = jnp.einsum("bod,bqd->boq", q, context)          # bmm(q, c^T)
    w = jax.nn.softmax(scores, axis=-1)
    mix = jnp.einsum("boq,bqd->bod", w, context)             # bmm(w, c)
    combined = jnp.concatenate([mix, q], axis=-1)            # (B, O, 2D)
    out = jnp.einsum("boc,dc->bod", combined, linear_out_w)  # linear_out
    return jnp.tanh(out), w


if __name__ == "__main__":
    key = jax.random.PRNGKey(0)
    k_q, k_c, k_win, k_wout = jax.random.split(key, 4)

    B, O, Q, D = 2, 8, 8, 32   # batch, output_len, query_len, dimensions

    query = jax.random.normal(k_q, (B, O, D), dtype=jnp.float32)
    context = jax.random.normal(k_c, (B, Q, D), dtype=jnp.float32)

    # Deterministic parameter init, shapes per nn.Linear(out, in), no bias.
    bound_in = 1.0 / (D ** 0.5)
    bound_out = 1.0 / ((2 * D) ** 0.5)
    linear_in_w = jax.random.uniform(k_win, (D, D), jnp.float32,
                                     -bound_in, bound_in)
    linear_out_w = jax.random.uniform(k_wout, (D, 2 * D), jnp.float32,
                                      -bound_out, bound_out)

    out, attn = attention_forward(query, context, linear_in_w, linear_out_w)
    jax.block_until_ready((out, attn))

    ref_out, ref_attn = attention_reference(query, context,
                                            linear_in_w, linear_out_w)
    assert jnp.allclose(out, ref_out, atol=1e-5, rtol=1e-5)
    assert jnp.allclose(attn, ref_attn, atol=1e-5, rtol=1e-5)

    print("KERNEL_OK")
</pallas_src>

<mosaic_0001>
module attributes {stable_mosaic.version = 11 : i64} {
  func.func @_attn_kernel(%arg0: i32, %arg1: i32, %arg2: memref<1x8x128xf32, #tpu.memory_space<vmem>>, %arg3: memref<1x128x128xf32, #tpu.memory_space<vmem>>, %arg4: memref<128x128xf32, #tpu.memory_space<vmem>>, %arg5: memref<128x128xf32, #tpu.memory_space<vmem>>, %arg6: memref<128x128xf32, #tpu.memory_space<vmem>>, %arg7: memref<1x8x128xf32, #tpu.memory_space<vmem>>, %arg8: memref<1x8x128xf32, #tpu.memory_space<vmem>>) attributes {dimension_semantics = [#tpu.dimension_semantics<parallel>, #tpu.dimension_semantics<parallel>], iteration_bounds = array<i64: 2, 1>, scalar_prefetch = 0 : i64, scratch_operands = 0 : i64, tpu.core_type = #tpu.core_type<tc>, window_params = [{transform_indices = @transform_0, window_bounds = array<i64: 1, 8, 128>}, {transform_indices = @transform_1, window_bounds = array<i64: 1, 128, 128>}, {pipeline_mode = #tpu.pipeline_mode<synchronous>, transform_indices = @transform_2, window_bounds = array<i64: 128, 128>}, {pipeline_mode = #tpu.pipeline_mode<synchronous>, transform_indices = @transform_3, window_bounds = array<i64: 128, 128>}, {pipeline_mode = #tpu.pipeline_mode<synchronous>, transform_indices = @transform_4, window_bounds = array<i64: 128, 128>}, {transform_indices = @transform_5, window_bounds = array<i64: 1, 8, 128>}, {transform_indices = @transform_6, window_bounds = array<i64: 1, 8, 128>}]} {
    %c0 = arith.constant 0 : index
    %c0_0 = arith.constant 0 : index
    %c0_1 = arith.constant 0 : index
    %0 = vector.load %arg2[%c0, %c0_0, %c0_1] : memref<1x8x128xf32, #tpu.memory_space<vmem>>, vector<1x8x128xf32>
    %1 = vector.shape_cast %0 : vector<1x8x128xf32> to vector<8x128xf32>
    %c0_2 = arith.constant 0 : index
    %c0_3 = arith.constant 0 : index
    %c0_4 = arith.constant 0 : index
    %2 = vector.load %arg3[%c0_2, %c0_3, %c0_4] : memref<1x128x128xf32, #tpu.memory_space<vmem>>, vector<1x128x128xf32>
    %3 = vector.shape_cast %2 : vector<1x128x128xf32> to vector<128x128xf32>
    %c0_5 = arith.constant 0 : index
    %c0_6 = arith.constant 0 : index
    %4 = vector.load %arg4[%c0_5, %c0_6] : memref<128x128xf32, #tpu.memory_space<vmem>>, vector<128x128xf32>
    %cst = arith.constant dense<0.000000e+00> : vector<8x128xf32>
    %5 = tpu.matmul %1, %4, %cst {dimension_numbers = #tpu.dot_dimension_numbers<[1], [0], [0], [1], [0, 0, 1, 1], [], []>} : vector<8x128xf32>, vector<128x128xf32>, vector<8x128xf32> -> vector<8x128xf32>
    %cst_7 = arith.constant dense<0.000000e+00> : vector<8x128xf32>
    %6 = tpu.matmul %5, %3, %cst_7 {dimension_numbers = #tpu.dot_dimension_numbers<[1], [1], [0], [0], [0, 0, 1, 0], [], []>} : vector<8x128xf32>, vector<128x128xf32>, vector<8x128xf32> -> vector<8x128xf32>
    %7 = tpu.iota {dimensions = array<i32: 1>} : vector<8x128xi32>
    %c8_i32 = arith.constant 8 : i32
    %8 = vector.broadcast %c8_i32 : i32 to vector<8x128xi32>
    %9 = arith.cmpi slt, %7, %8 : vector<8x128xi32>
    %cst_8 = arith.constant -3.40282347E+38 : f32
    %10 = vector.broadcast %cst_8 : f32 to vector<8x128xf32>
    %11 = arith.select %9, %6, %10 : vector<8x128xi1>, vector<8x128xf32>
    %cst_9 = arith.constant dense<0xFF800000> : vector<8xf32>
    %12 = vector.multi_reduction <maximumf>, %11, %cst_9 [1] : vector<8x128xf32> to vector<8xf32>
    %13 = vector.shape_cast %12 : vector<8xf32> to vector<8x1xf32>
    %14 = vector.broadcast %13 : vector<8x1xf32> to vector<8x128xf32>
    %15 = arith.subf %11, %14 : vector<8x128xf32>
    %16 = math.exp %15 : vector<8x128xf32>
    %cst_10 = arith.constant dense<0.000000e+00> : vector<8xf32>
    %17 = vector.multi_reduction <add>, %16, %cst_10 [1] : vector<8x128xf32> to vector<8xf32>
    %18 = vector.shape_cast %17 : vector<8xf32> to vector<8x1xf32>
    %19 = tpu.reciprocal %18 : vector<8x1xf32> -> vector<8x1xf32>
    %20 = vector.broadcast %19 : vector<8x1xf32> to vector<8x128xf32>
    %21 = arith.mulf %16, %20 : vector<8x128xf32>
    %cst_11 = arith.constant dense<0.000000e+00> : vector<8x128xf32>
    %22 = tpu.matmul %21, %3, %cst_11 {dimension_numbers = #tpu.dot_dimension_numbers<[1], [0], [0], [1], [0, 0, 1, 1], [], []>} : vector<8x128xf32>, vector<128x128xf32>, vector<8x128xf32> -> vector<8x128xf32>
    %c0_12 = arith.constant 0 : index
    %c0_13 = arith.constant 0 : index
    %23 = vector.load %arg5[%c0_12, %c0_13] : memref<128x128xf32, #tpu.memory_space<vmem>>, vector<128x128xf32>
    %cst_14 = arith.constant dense<0.000000e+00> : vector<8x128xf32>
    %24 = tpu.matmul %22, %23, %cst_14 {dimension_numbers = #tpu.dot_dimension_numbers<[1], [0], [0], [1], [0, 0, 1, 1], [], []>} : vector<8x128xf32>, vector<128x128xf32>, vector<8x128xf32> -> vector<8x128xf32>
    %c0_15 = arith.constant 0 : index
    %c0_16 = arith.constant 0 : index
    %25 = vector.load %arg6[%c0_15, %c0_16] : memref<128x128xf32, #tpu.memory_space<vmem>>, vector<128x128xf32>
    %cst_17 = arith.constant dense<0.000000e+00> : vector<8x128xf32>
    %26 = tpu.matmul %5, %25, %cst_17 {dimension_numbers = #tpu.dot_dimension_numbers<[1], [0], [0], [1], [0, 0, 1, 1], [], []>} : vector<8x128xf32>, vector<128x128xf32>, vector<8x128xf32> -> vector<8x128xf32>
    %27 = arith.addf %24, %26 : vector<8x128xf32>
    %28 = math.tanh %27 : vector<8x128xf32>
    %c0_18 = arith.constant 0 : index
    %c0_19 = arith.constant 0 : index
    %c0_20 = arith.constant 0 : index
    %29 = vector.load %arg7[%c0_18, %c0_19, %c0_20] : memref<1x8x128xf32, #tpu.memory_space<vmem>>, vector<1x8x128xf32>
    %30 = vector.shape_cast %29 : vector<1x8x128xf32> to vector<8x128xf32>
    %31 = vector.shape_cast %28 : vector<8x128xf32> to vector<1x8x128xf32>
    tpu.vector_store %arg7[%c0_18, %c0_19, %c0_20], %31 {strides = array<i32>} : memref<1x8x128xf32, #tpu.memory_space<vmem>>, vector<1x8x128xf32>,
    %c0_21 = arith.constant 0 : index
    %c0_22 = arith.constant 0 : index
    %c0_23 = arith.constant 0 : index
    %32 = vector.load %arg8[%c0_21, %c0_22, %c0_23] : memref<1x8x128xf32, #tpu.memory_space<vmem>>, vector<1x8x128xf32>
    %33 = vector.shape_cast %32 : vector<1x8x128xf32> to vector<8x128xf32>
    %34 = vector.shape_cast %21 : vector<8x128xf32> to vector<1x8x128xf32>
    tpu.vector_store %arg8[%c0_21, %c0_22, %c0_23], %34 {strides = array<i32>} : memref<1x8x128xf32, #tpu.memory_space<vmem>>, vector<1x8x128xf32>,
    return
  }
  func.func @transform_0(%arg0: i32, %arg1: i32) -> (i32, i32, i32) {
    %c0_i32 = arith.constant 0 : i32
    %c0_i32_0 = arith.constant 0 : i32
    return %arg0, %arg1, %c0_i32 : i32, i32, i32
  }
  func.func @transform_1(%arg0: i32, %arg1: i32) -> (i32, i32, i32) {
    %c0_i32 = arith.constant 0 : i32
    %c0_i32_0 = arith.constant 0 : i32
    %c0_i32_1 = arith.constant 0 : i32
    return %arg0, %c0_i32, %c0_i32_0 : i32, i32, i32
  }
  func.func @transform_2(%arg0: i32, %arg1: i32) -> (i32, i32) {
    %c0_i32 = arith.constant 0 : i32
    %c0_i32_0 = arith.constant 0 : i32
    %c0_i32_1 = arith.constant 0 : i32
    return %c0_i32, %c0_i32_0 : i32, i32
  }
  func.func @transform_3(%arg0: i32, %arg1: i32) -> (i32, i32) {
    %c0_i32 = arith.constant 0 : i32
    %c0_i32_0 = arith.constant 0 : i32
    %c0_i32_1 = arith.constant 0 : i32
    return %c0_i32, %c0_i32_0 : i32, i32
  }
  func.func @transform_4(%arg0: i32, %arg1: i32) -> (i32, i32) {
    %c0_i32 = arith.constant 0 : i32
    %c0_i32_0 = arith.constant 0 : i32
    %c0_i32_1 = arith.constant 0 : i32
    return %c0_i32, %c0_i32_0 : i32, i32
  }
  func.func @transform_5(%arg0: i32, %arg1: i32) -> (i32, i32, i32) {
    %c0_i32 = arith.constant 0 : i32
    %c0_i32_0 = arith.constant 0 : i32
    return %arg0, %arg1, %c0_i32 : i32, i32, i32
  }
  func.func @transform_6(%arg0: i32, %arg1: i32) -> (i32, i32, i32) {
    %c0_i32 = arith.constant 0 : i32
    %c0_i32_0 = arith.constant 0 : i32
    return %arg0, %arg1, %c0_i32 : i32, i32, i32
  }
}

</mosaic_0001>

<llo_original>
// kernel: tpu_custom_call.1
$region0: #{tpu_custom_call.1}
  #allocation0 [shape = 'u32[]', space=smem, size = 0x4, offset = 0x4, fixed_abs, tag = 'smem constant byte address 0x4 - core index']
  #allocation1 [shape = 'u32[144,128]{1,0:T(1,128)}', space=vmem, size = 0x12000, scoped, tag = 'internal scratch']
  %s0 = inlined_call_operand.hbm [shape: f32[2,8,128], index: 0, kind: input, shape index: {}]
  %s1 = inlined_call_operand.hbm [shape: f32[2,128,128], index: 1, kind: input, shape index: {}]
  %s2 = inlined_call_operand.hbm [shape: f32[128,128], index: 2, kind: input, shape index: {}]
  %s3 = inlined_call_operand.hbm [shape: f32[128,128], index: 3, kind: input, shape index: {}]
  %s4 = inlined_call_operand.hbm [shape: f32[128,128], index: 4, kind: input, shape index: {}]
  %s5 = inlined_call_operand.hbm [shape: f32[2,8,128], index: 5, kind: output, shape index: {0}]
  %s6 = inlined_call_operand.hbm [shape: f32[2,8,128], index: 6, kind: output, shape index: {1}]
  %7 = xla_tuple %s5, %s6
  %s8 = sld [smem:[#allocation0]]
  $region81: #{tpu_custom_call.1} parent=0
    _
  %s10 = ssub.s32 1, %s8
  %s11 = scalar_select 0, %s10, %s8
  $region1: #{tpu_custom_call.1} parent=0
    #allocation2 [shape = 'u8[8192]{0}', space=vmem, size = 0x2000, scoped, tag = 'input window, operand 0']
    #allocation3 [shape = 's32[2]{0}', space=sflag, size = 0x8, scoped, tag = 'scoped memory for tpu_custom_call.1']
    #allocation4 [shape = 's32[2]{0}', space=sflag, size = 0x8, scoped, tag = 'scoped memory for tpu_custom_call.1']
    #allocation5 [shape = 'u8[131072]{0}', space=vmem, size = 0x20000, scoped, tag = 'input window, operand 1']
    #allocation6 [shape = 's32[2]{0}', space=sflag, size = 0x8, scoped, tag = 'scoped memory for tpu_custom_call.1']
    #allocation7 [shape = 'u8[65536]{0}', space=vmem, size = 0x10000, scoped, tag = 'input window, operand 2, single buffered']
    #allocation8 [shape = 'u8[65536]{0}', space=vmem, size = 0x10000, scoped, tag = 'input window, operand 3, single buffered']
    #allocation9 [shape = 's32[1]{0}', space=sflag, size = 0x4, scoped, tag = 'scoped memory for tpu_custom_call.1']
    #allocation10 [shape = 'u8[65536]{0}', space=vmem, size = 0x10000, scoped, tag = 'input window, operand 4, single buffered']
    #allocation11 [shape = 'u8[8192]{0}', space=vmem, size = 0x2000, scoped, tag = 'output window, operand 0']
    #allocation12 [shape = 'u8[8192]{0}', space=vmem, size = 0x2000, scoped, tag = 'output window, operand 1']
    #allocation13 [shape = 's32[2]{0}', space=sflag, size = 0x8, scoped, tag = 'scoped memory for tpu_custom_call.1']
    %12 = vsyncpa [#allocation3], 0
    %s13 = scalar_lea.sflag [#allocation3], 1
    %14 = vsyncpa %s13, 0
    %15 = vsyncpa [#allocation6], 0
    %s16 = scalar_lea.sflag [#allocation6], 1
    %17 = vsyncpa %s16, 0
    %18 = vsyncpa [#allocation9], 0
    %19 = vsyncpa [#allocation4], 0
    %s20 = scalar_lea.sflag [#allocation4], 1
    %21 = vsyncpa %s20, 0
    %22 = vsyncpa [#allocation13], 0
    %s23 = scalar_lea.sflag [#allocation13], 1
    %24 = vsyncpa %s23, 0
    loop: start=0, step=1, limit=4
    $region2: #{tpu_custom_call.1} parent=1 // loop_pre_header
      _
    $region3: #{tpu_custom_call.1} parent=1 // loop_header
      %s26 = sphi 0, %s30
      %p27 = scmp.ge.s32.totalorder %s26, 4
      %s33 = sphi 0, %s45
      %s34 = sphi 0, %s41
      %s35 = sphi 0, %s33
      %s36 = sphi 0, %s34
      %s37 = sphi 0, %s35
      %s38 = sphi 0, %s36
      %s50 = sphi 0, %s52
      %s53 = sphi 0, %s50
      %s54 = sphi 0, %s53
      %s70 = sphi 0, %s54
      %s76 = sphi 0, %s78
      %s79 = sphi 0, %s76
      %s80 = sphi 0, %s79
      %s96 = sphi 0, %s80
      %s100 = sphi 0, %s100
      %s102 = sphi 0, %s100
      %s103 = sphi 0, %s102
      %s117 = sphi 0, %s103
      %s121 = sphi 0, %s121
      %s123 = sphi 0, %s121
      %s124 = sphi 0, %s123
      %s138 = sphi 0, %s124
      %s142 = sphi 0, %s142
      %s144 = sphi 0, %s142
      %s145 = sphi 0, %s144
      %s159 = sphi 0, %s145
      %s167 = sphi 0, %s169
      %s170 = sphi 0, %s167
      %s171 = sphi 0, %s170
      %s187 = sphi 0, %s171
      %s195 = sphi 0, %s197
      %s198 = sphi 0, %s195
      %s199 = sphi 0, %s198
      %s215 = sphi 0, %s199
    $region4: #{tpu_custom_call.1} parent=1 // loop_header_branch
      %29 = sbr.rel (%p27) target = $region8
    $region5: #{tpu_custom_call.1} parent=1 // loop_body
      %s31 = ssub.s32 %s26, 1
      %s32 = ssub.s32 %s26, 2
      %s39 = sadd.s32 1, %s34
      %p40 = scmp.ge.s32.totalorder %s39, 1
      %s41 = scalar_select %p40, 0, %s39
      %s42 = sadd.s32 1, %s33
      %s43 = scalar_select %p40, %s42, %s33
      %p44 = scmp.ge.s32.totalorder %s43, 2
      %s45 = scalar_select %p44, 0, %s43
      %s46 = ssub.s32 %s33, %s45
      %s47 = ssub.s32 %s34, %s41
      %s48 = sor.u32 %s46, %s47
      %p49 = scmp.eq.s32.totalorder %s48, 0
      %s51 = sadd.s32 %s50, 1
      %s52 = scalar_select %p49, %s50, %s51
      %p55 = pneg %p49
      %p56 = scmp.eq.s32.totalorder %s26, 1
      %p57 = por %p55, %p56
      %p58 = scmp.ne.s32.totalorder %s50, %s53
      %p59 = scmp.eq.s32.totalorder %s26, 0
      %p60 = por %p58, %p59
      %p61 = scmp.ne.s32.totalorder %s50, %s53
      %p62 = scmp.eq.s32.totalorder %s31, 1
      %p63 = por %p61, %p62
      %p64 = scmp.ne.s32.totalorder %s53, %s54
      %p65 = scmp.eq.s32.totalorder %s31, 0
      %p66 = por %p64, %p65
      %p67 = scmp.ne.s32.totalorder %s53, %s54
      %p68 = scmp.eq.s32.totalorder %s32, 1
      %p69 = por %p67, %p68
      %p71 = scmp.ne.s32.totalorder %s54, %s70
      %p72 = scmp.eq.s32.totalorder %s32, 0
      %p73 = por %p71, %p72
      %s74 = ssub.s32 %s33, %s45
      %p75 = scmp.eq.s32.totalorder %s74, 0
      %s77 = sadd.s32 %s76, 1
      %s78 = scalar_select %p75, %s76, %s77
      %p81 = pneg %p75
      %p82 = scmp.eq.s32.totalorder %s26, 1
      %p83 = por %p81, %p82
      %p84 = scmp.ne.s32.totalorder %s76, %s79
      %p85 = scmp.eq.s32.totalorder %s26, 0
      %p86 = por %p84, %p85
      %p87 = scmp.ne.s32.totalorder %s76, %s79
      %p88 = scmp.eq.s32.totalorder %s31, 1
      %p89 = por %p87, %p88
      %p90 = scmp.ne.s32.totalorder %s79, %s80
      %p91 = scmp.eq.s32.totalorder %s31, 0
      %p92 = por %p90, %p91
      %p93 = scmp.ne.s32.totalorder %s79, %s80
      %p94 = scmp.eq.s32.totalorder %s32, 1
      %p95 = por %p93, %p94
      %p97 = scmp.ne.s32.totalorder %s80, %s96
      %p98 = scmp.eq.s32.totalorder %s32, 0
      %p99 = por %p97, %p98
      %s101 = sadd.s32 %s100, 1
      %p104 = scmp.eq.s32.totalorder %s26, 1
      %p105 = scmp.ne.s32.totalorder %s100, %s102
      %p106 = scmp.eq.s32.totalorder %s26, 0
      %p107 = por %p105, %p106
      %p108 = scmp.ne.s32.totalorder %s100, %s102
      %p109 = scmp.eq.s32.totalorder %s31, 1
      %p110 = por %p108, %p109
      %p111 = scmp.ne.s32.totalorder %s102, %s103
      %p112 = scmp.eq.s32.totalorder %s31, 0
      %p113 = por %p111, %p112
      %p114 = scmp.ne.s32.totalorder %s102, %s103
      %p115 = scmp.eq.s32.totalorder %s32, 1
      %p116 = por %p114, %p115
      %p118 = scmp.ne.s32.totalorder %s103, %s117
      %p119 = scmp.eq.s32.totalorder %s32, 0
      %p120 = por %p118, %p119
      %s122 = sadd.s32 %s121, 1
      %p125 = scmp.eq.s32.totalorder %s26, 1
      %p126 = scmp.ne.s32.totalorder %s121, %s123
      %p127 = scmp.eq.s32.totalorder %s26, 0
      %p128 = por %p126, %p127
      %p129 = scmp.ne.s32.totalorder %s121, %s123
      %p130 = scmp.eq.s32.totalorder %s31, 1
      %p131 = por %p129, %p130
      %p132 = scmp.ne.s32.totalorder %s123, %s124
      %p133 = scmp.eq.s32.totalorder %s31, 0
      %p134 = por %p132, %p133
      %p135 = scmp.ne.s32.totalorder %s123, %s124
      %p136 = scmp.eq.s32.totalorder %s32, 1
      %p137 = por %p135, %p136
      %p139 = scmp.ne.s32.totalorder %s124, %s138
      %p140 = scmp.eq.s32.totalorder %s32, 0
      %p141 = por %p139, %p140
      %s143 = sadd.s32 %s142, 1
      %p146 = scmp.eq.s32.totalorder %s26, 1
      %p147 = scmp.ne.s32.totalorder %s142, %s144
      %p148 = scmp.eq.s32.totalorder %s26, 0
      %p149 = por %p147, %p148
      %p150 = scmp.ne.s32.totalorder %s142, %s144
      %p151 = scmp.eq.s32.totalorder %s31, 1
      %p152 = por %p150, %p151
      %p153 = scmp.ne.s32.totalorder %s144, %s145
      %p154 = scmp.eq.s32.totalorder %s31, 0
      %p155 = por %p153, %p154
      %p156 = scmp.ne.s32.totalorder %s144, %s145
      %p157 = scmp.eq.s32.totalorder %s32, 1
      %p158 = por %p156, %p157
      %p160 = scmp.ne.s32.totalorder %s145, %s159
      %p161 = scmp.eq.s32.totalorder %s32, 0
      %p162 = por %p160, %p161
      %s163 = ssub.s32 %s33, %s45
      %s164 = ssub.s32 %s34, %s41
      %s165 = sor.u32 %s163, %s164
      %p166 = scmp.eq.s32.totalorder %s165, 0
      %s168 = sadd.s32 %s167, 1
      %s169 = scalar_select %p166, %s167, %s168
      %p172 = pneg %p166
      %p173 = scmp.eq.s32.totalorder %s26, 1
      %p174 = por %p172, %p173
      %p175 = scmp.ne.s32.totalorder %s167, %s170
      %p176 = scmp.eq.s32.totalorder %s26, 0
      %p177 = por %p175, %p176
      %p178 = scmp.ne.s32.totalorder %s167, %s170
      %p179 = scmp.eq.s32.totalorder %s31, 1
      %p180 = por %p178, %p179
      %p181 = scmp.ne.s32.totalorder %s170, %s171
      %p182 = scmp.eq.s32.totalorder %s31, 0
      %p183 = por %p181, %p182
      %p184 = scmp.ne.s32.totalorder %s170, %s171
      %p185 = scmp.eq.s32.totalorder %s32, 1
      %p186 = por %p184, %p185
      %p188 = scmp.ne.s32.totalorder %s171, %s187
      %p189 = scmp.eq.s32.totalorder %s32, 0
      %p190 = por %p188, %p189
      %s191 = ssub.s32 %s33, %s45
      %s192 = ssub.s32 %s34, %s41
      %s193 = sor.u32 %s191, %s192
      %p194 = scmp.eq.s32.totalorder %s193, 0
      %s196 = sadd.s32 %s195, 1
      %s197 = scalar_select %p194, %s195, %s196
      %p200 = pneg %p194
      %p201 = scmp.eq.s32.totalorder %s26, 1
      %p202 = por %p200, %p201
      %p203 = scmp.ne.s32.totalorder %s195, %s198
      %p204 = scmp.eq.s32.totalorder %s26, 0
      %p205 = por %p203, %p204
      %p206 = scmp.ne.s32.totalorder %s195, %s198
      %p207 = scmp.eq.s32.totalorder %s31, 1
      %p208 = por %p206, %p207
      %p209 = scmp.ne.s32.totalorder %s198, %s199
      %p210 = scmp.eq.s32.totalorder %s31, 0
      %p211 = por %p209, %p210
      %p212 = scmp.ne.s32.totalorder %s198, %s199
      %p213 = scmp.eq.s32.totalorder %s32, 1
      %p214 = por %p212, %p213
      %p216 = scmp.ne.s32.totalorder %s199, %s215
      %p217 = scmp.eq.s32.totalorder %s32, 0
      %p218 = por %p216, %p217
      %p219 = scmp.le.s32.totalorder 1, %s26
      %p220 = scmp.lt.s32.totalorder %s26, 3
      %p221 = pnand %p219, %p220
      %p222 = pneg %p221
      // Predicated region
      $region9: #{tpu_custom_call.1} parent=5 // pred_check
        _
      $region10: #{tpu_custom_call.1} parent=5 // pred_check_branch
        %224 = sbr.rel (%p221) target = $region12
      $region11: #{tpu_custom_call.1} parent=5 // pred_region
        %s225 = ssub.s32 %s26, 1
        // Predicated region
        $region13: #{tpu_custom_call.1} parent=11 // pred_check
          %p226 = pneg %p113
        $region14: #{tpu_custom_call.1} parent=11 // pred_check_branch
          %228 = sbr.rel (%p226) target = $region16
        $region15: #{tpu_custom_call.1} parent=11 // pred_region
          %s230 = ssub.s32 2048, 2048
          %231 = vsyncadd [#allocation6], %s230
          %s232 = sshll.u32 [#allocation7], 4
          %s233 = int_to_ptr.vmem [resolvable:$true] %s232
          %238 = dma.hbm_to_vmem [thread:$0]  %s2, 2048, %s233, [#allocation6], 128, 128, 8
        $region16: #{tpu_custom_call.1} parent=11 // pred_fallthru
          _
        // Predicated region
        $region17: #{tpu_custom_call.1} parent=11 // pred_check
          %p239 = pneg %p134
        $region18: #{tpu_custom_call.1} parent=11 // pred_check_branch
          %241 = sbr.rel (%p239) target = $region20
        $region19: #{tpu_custom_call.1} parent=11 // pred_region
          %s243 = ssub.s32 2048, 2048
          %244 = vsyncadd [#allocation9], %s243
          %s245 = sshll.u32 [#allocation8], 4
          %s246 = int_to_ptr.vmem [resolvable:$true] %s245
          %251 = dma.hbm_to_vmem [thread:$0]  %s3, 2048, %s246, [#allocation9], 128, 128, 8
        $region20: #{tpu_custom_call.1} parent=11 // pred_fallthru
          _
        // Predicated region
        $region21: #{tpu_custom_call.1} parent=11 // pred_check
          %p252 = pneg %p155
        $region22: #{tpu_custom_call.1} parent=11 // pred_check_branch
          %254 = sbr.rel (%p252) target = $region24
        $region23: #{tpu_custom_call.1} parent=11 // pred_region
          %s256 = ssub.s32 2048, 2048
          %257 = vsyncadd [#allocation9], %s256
          %s258 = sshll.u32 [#allocation10], 4
          %s259 = int_to_ptr.vmem [resolvable:$true] %s258
          %264 = dma.hbm_to_vmem [thread:$0]  %s4, 2048, %s259, [#allocation9], 128, 128, 8
        $region24: #{tpu_custom_call.1} parent=11 // pred_fallthru
          _
      $region12: #{tpu_custom_call.1} parent=5 // pred_fallthru
        _
      %p265 = scmp.lt.s32.totalorder %s26, 2
      // Predicated region
      $region25: #{tpu_custom_call.1} parent=5 // pred_check
        %p266 = pneg %p265
      $region26: #{tpu_custom_call.1} parent=5 // pred_check_branch
        %268 = sbr.rel (%p266) target = $region28
      $region27: #{tpu_custom_call.1} parent=5 // pred_region
        // Predicated region
        $region29: #{tpu_custom_call.1} parent=27 // pred_check
          %p269 = pneg %p60
        $region30: #{tpu_custom_call.1} parent=27 // pred_check_branch
          %271 = sbr.rel (%p269) target = $region32
        $region31: #{tpu_custom_call.1} parent=27 // pred_region
          %s272 = sand.u32 %s50, 1
          %s273 = scalar_lea.sflag [#allocation3], %s272
          %s274 = sand.u32 %s50, 1
          %s275 = smul.addr %s274, 8
          %s276 = scalar_lea.vmem [#allocation2], %s275
          %s278 = ssub.s32 128, 128
          %279 = vsyncadd %s273, %s278
          %s280 = sadd.s32 %s34, %s33
          %s281 = smul.addr %s280, 128
          %s282 = scalar_lea.hbm %s0, %s281
          %s284 = sshll.u32 %s276, 4
          %s285 = int_to_ptr.vmem [resolvable:$true] %s284
          %287 = dma.hbm_to_vmem [thread:$0]  %s282, 128, %s285, %s273
        $region32: #{tpu_custom_call.1} parent=27 // pred_fallthru
          _
        // Predicated region
        $region33: #{tpu_custom_call.1} parent=27 // pred_check
          %p288 = pneg %p86
        $region34: #{tpu_custom_call.1} parent=27 // pred_check_branch
          %290 = sbr.rel (%p288) target = $region36
        $region35: #{tpu_custom_call.1} parent=27 // pred_region
          %s291 = sand.u32 %s26, 1
          %s292 = scalar_lea.sflag [#allocation6], %s291
          %s293 = sand.u32 %s76, 1
          %s294 = smul.addr %s293, 128
          %s295 = scalar_lea.vmem [#allocation5], %s294
          %s297 = ssub.s32 2048, 2048
          %298 = vsyncadd %s292, %s297
          %s299 = smul.addr %s33, 16
          %s300 = smul.addr %s299, 128
          %s301 = scalar_lea.hbm %s1, %s300
          %s302 = sshll.u32 %s295, 4
          %s303 = int_to_ptr.vmem [resolvable:$true] %s302
          %308 = dma.hbm_to_vmem [thread:$0]  %s301, 2048, %s303, %s292, 128, 128, 8
        $region36: #{tpu_custom_call.1} parent=27 // pred_fallthru
          _
      $region28: #{tpu_custom_call.1} parent=5 // pred_fallthru
        _
      %p309 = scmp.le.s32.totalorder 1, %s26
      %p310 = scmp.lt.s32.totalorder %s26, 3
      %p311 = pnand %p309, %p310
      %p312 = pneg %p311
      // Predicated region
      $region37: #{tpu_custom_call.1} parent=5 // pred_check
        _
      $region38: #{tpu_custom_call.1} parent=5 // pred_check_branch
        %314 = sbr.rel (%p311) target = $region40
      $region39: #{tpu_custom_call.1} parent=5 // pred_region
        %s315 = ssub.s32 %s26, 1
        %s316 = sand.u32 %s53, 1
        %s317 = scalar_lea.sflag [#allocation3], %s316
        %s318 = sand.u32 %s53, 1
        %s319 = smul.addr %s318, 8
        %s320 = scalar_lea.vmem [#allocation2], %s319
        // Predicated region
        $region41: #{tpu_custom_call.1} parent=39 // pred_check
          %p321 = pneg %p66
        $region42: #{tpu_custom_call.1} parent=39 // pred_check_branch
          %323 = sbr.rel (%p321) target = $region44
        $region43: #{tpu_custom_call.1} parent=39 // pred_region
          %324 = dma.done %s317, 128
        $region44: #{tpu_custom_call.1} parent=39 // pred_fallthru
          _
        %s325 = sand.u32 %s31, 1
        %s326 = scalar_lea.sflag [#allocation6], %s325
        %s327 = sand.u32 %s79, 1
        %s328 = smul.addr %s327, 128
        %s329 = scalar_lea.vmem [#allocation5], %s328
        // Predicated region
        $region45: #{tpu_custom_call.1} parent=39 // pred_check
          %p330 = pneg %p92
        $region46: #{tpu_custom_call.1} parent=39 // pred_check_branch
          %332 = sbr.rel (%p330) target = $region48
        $region47: #{tpu_custom_call.1} parent=39 // pred_region
          %333 = dma.done %s326, 2048
        $region48: #{tpu_custom_call.1} parent=39 // pred_fallthru
          _
        // Predicated region
        $region49: #{tpu_custom_call.1} parent=39 // pred_check
          %p334 = pneg %p113
        $region50: #{tpu_custom_call.1} parent=39 // pred_check_branch
          %336 = sbr.rel (%p334) target = $region52
        $region51: #{tpu_custom_call.1} parent=39 // pred_region
          %337 = dma.done [#allocation6], 2048
        $region52: #{tpu_custom_call.1} parent=39 // pred_fallthru
          _
        // Predicated region
        $region53: #{tpu_custom_call.1} parent=39 // pred_check
          %p338 = pneg %p134
        $region54: #{tpu_custom_call.1} parent=39 // pred_check_branch
          %340 = sbr.rel (%p338) target = $region56
        $region55: #{tpu_custom_call.1} parent=39 // pred_region
          %341 = dma.done [#allocation9], 2048
        $region56: #{tpu_custom_call.1} parent=39 // pred_fallthru
          _
        // Predicated region
        $region57: #{tpu_custom_call.1} parent=39 // pred_check
          %p342 = pneg %p155
        $region58: #{tpu_custom_call.1} parent=39 // pred_check_branch
          %344 = sbr.rel (%p342) target = $region60
        $region59: #{tpu_custom_call.1} parent=39 // pred_region
          %345 = dma.done [#allocation9], 2048
        $region60: #{tpu_custom_call.1} parent=39 // pred_fallthru
          _
        %s346 = sand.u32 %s53, 1
        %s347 = scalar_lea.sflag [#allocation3], %s346
        %s348 = sand.u32 %s53, 1
        %s349 = smul.addr %s348, 8
        %s350 = scalar_lea.vmem [#allocation2], %s349
        %p351 = pneg %p66
        %p352 = pneg %p63
        %s353 = sand.u32 %s31, 1
        %s354 = scalar_lea.sflag [#allocation6], %s353
        %s355 = sand.u32 %s79, 1
        %s356 = smul.addr %s355, 128
        %s357 = scalar_lea.vmem [#allocation5], %s356
        %p358 = pneg %p92
        %p359 = pneg %p89
        %p360 = pneg %p113
        %p361 = pneg %p110
        %p362 = pneg %p134
        %p363 = pneg %p131
        %p364 = pneg %p155
        %p365 = pneg %p152
        %p366 = pneg %p183
        %p367 = pneg %p180
        %s368 = sand.u32 %s170, 1
        %s369 = scalar_lea.sflag [#allocation4], %s368
        %s370 = sand.u32 %s170, 1
        %s371 = smul.addr %s370, 8
        %s372 = scalar_lea.vmem [#allocation11], %s371
        %p373 = pneg %p211
        %p374 = pneg %p208
        %s375 = sand.u32 %s198, 1
        %s376 = scalar_lea.sflag [#allocation13], %s375
        %s377 = sand.u32 %s198, 1
        %s378 = smul.addr %s377, 8
        %s379 = scalar_lea.vmem [#allocation12], %s378
        %v380 = vld [vmem:[%s320] sm:$0xff]
        %v381 = vld [vmem:[%s329] sm:$0xff]
        %v382 = vld [vmem:[%s329 + $0x8] sm:$0xff]
        %v383 = vld [vmem:[%s329 + $0x10] sm:$0xff]
        %v384 = vld [vmem:[%s329 + $0x18] sm:$0xff]
        %v385 = vld [vmem:[%s329 + $0x20] sm:$0xff]
        %v386 = vld [vmem:[%s329 + $0x28] sm:$0xff]
        %v387 = vld [vmem:[%s329 + $0x30] sm:$0xff]
        %v388 = vld [vmem:[%s329 + $0x38] sm:$0xff]
        %v389 = vld [vmem:[%s329 + $0x40] sm:$0xff]
        %v390 = vld [vmem:[%s329 + $0x48] sm:$0xff]
        %v391 = vld [vmem:[%s329 + $0x50] sm:$0xff]
        %v392 = vld [vmem:[%s329 + $0x58] sm:$0xff]
        %v393 = vld [vmem:[%s329 + $0x60] sm:$0xff]
        %v394 = vld [vmem:[%s329 + $0x68] sm:$0xff]
        %v395 = vld [vmem:[%s329 + $0x70] sm:$0xff]
        %v396 = vld [vmem:[%s329 + $0x78] sm:$0xff]
        %v397 = vld [vmem:[#allocation7] sm:$0xff]
        %v398 = vld [vmem:[#allocation7 + $0x8] sm:$0xff]
        %v399 = vld [vmem:[#allocation7 + $0x10] sm:$0xff]
        %v400 = vld [vmem:[#allocation7 + $0x18] sm:$0xff]
        %v401 = vld [vmem:[#allocation7 + $0x20] sm:$0xff]
        %v402 = vld [vmem:[#allocation7 + $0x28] sm:$0xff]
        %v403 = vld [vmem:[#allocation7 + $0x30] sm:$0xff]
        %v404 = vld [vmem:[#allocation7 + $0x38] sm:$0xff]
        %v405 = vld [vmem:[#allocation7 + $0x40] sm:$0xff]
        %v406 = vld [vmem:[#allocation7 + $0x48] sm:$0xff]
        %v407 = vld [vmem:[#allocation7 + $0x50] sm:$0xff]
        %v408 = vld [vmem:[#allocation7 + $0x58] sm:$0xff]
        %v409 = vld [vmem:[#allocation7 + $0x60] sm:$0xff]
        %v410 = vld [vmem:[#allocation7 + $0x68] sm:$0xff]
        %v411 = vld [vmem:[#allocation7 + $0x70] sm:$0xff]
        %v412 = vld [vmem:[#allocation7 + $0x78] sm:$0xff]
        %413 = vmatprep.subr.mxu0 0.0
        %414 = vmatpush1.msra.mxu0 %v397
        %415 = vmatprep.subr.mxu0 0.0
        %416 = vmatpush1.msra.mxu0 %v398
        %417 = vmatprep.subr.mxu0 0.0
        %418 = vmatpush1.msra.mxu0 %v399
        %419 = vmatprep.subr.mxu0 0.0
        %420 = vmatpush1.msra.mxu0 %v400
        %421 = vmatprep.subr.mxu0 0.0
        %422 = vmatpush1.msra.mxu0 %v401
        %423 = vmatprep.subr.mxu0 0.0
        %424 = vmatpush1.msra.mxu0 %v402
        %425 = vmatprep.subr.mxu0 0.0
        %426 = vmatpush1.msra.mxu0 %v403
        %427 = vmatprep.subr.mxu0 0.0
        %428 = vmatpush1.msra.mxu0 %v404
        %429 = vmatprep.subr.mxu0 0.0
        %430 = vmatpush1.msra.mxu0 %v405
        %431 = vmatprep.subr.mxu0 0.0
        %432 = vmatpush1.msra.mxu0 %v406
        %433 = vmatprep.subr.mxu0 0.0
        %434 = vmatpush1.msra.mxu0 %v407
        %435 = vmatprep.subr.mxu0 0.0
        %436 = vmatpush1.msra.mxu0 %v408
        %437 = vmatprep.subr.mxu0 0.0
        %438 = vmatpush1.msra.mxu0 %v409
        %439 = vmatprep.subr.mxu0 0.0
        %440 = vmatpush1.msra.mxu0 %v410
        %441 = vmatprep.subr.mxu0 0.0
        %442 = vmatpush1.msra.mxu0 %v411
        %443 = vmatprep.subr.mxu0 0.0
        %444 = vmatpush1.msra.mxu0 %v412
        %445 = vmatprep.subr.mxu0 0.0
        %446 = vmatpush1.msra.mxu0 0.0
        %447 = vmatprep.subr.mxu0 0.0
        %448 = vmatpush1.msra.mxu0 0.0
        %449 = vmatprep.subr.mxu0 0.0
        %450 = vmatpush1.msra.mxu0 0.0
        %451 = vmatprep.subr.mxu0 0.0
        %452 = vmatpush1.msra.mxu0 0.0
        %453 = vmatprep.subr.mxu0 0.0
        %454 = vmatpush1.msra.mxu0 0.0
        %455 = vmatprep.subr.mxu0 0.0
        %456 = vmatpush1.msra.mxu0 0.0
        %457 = vmatprep.subr.mxu0 0.0
        %458 = vmatpush1.msra.mxu0 0.0
        %459 = vmatprep.subr.mxu0 0.0
        %460 = vmatpush1.msra.mxu0 0.0
        %461 = vmatprep.subr.mxu0 0.0
        %462 = vmatpush1.msra.mxu0 0.0
        %463 = vmatprep.subr.mxu0 0.0
        %464 = vmatpush1.msra.mxu0 0.0
        %465 = vmatprep.subr.mxu0 0.0
        %466 = vmatpush1.msra.mxu0 0.0
        %467 = vmatprep.subr.mxu0 0.0
        %468 = vmatpush1.msra.mxu0 0.0
        %469 = vmatprep.subr.mxu0 0.0
        %470 = vmatpush1.msra.mxu0 0.0
        %471 = vmatprep.subr.mxu0 0.0
        %472 = vmatpush1.msra.mxu0 0.0
        %473 = vmatprep.subr.mxu0 0.0
        %474 = vmatpush1.msra.mxu0 0.0
        %475 = vmatprep.subr.mxu0 0.0
        %476 = vmatpush1.msra.mxu0 0.0
        %477 = vmatprep.mubr.f32.mxu0 0.0
        %478 = vmatmul.mubr.f32.gmra.mrb[0].mxu0 %v380
        %v479 = vpop.f32.mrb[0].mxu0
        %v480 = vadd.f32 0.0, %v479
        %v481 = vpop.f32.mrb[0].mxu0
        %482 = vdwg.mxu0
        %483 = vmatprep.subr.mxu0 0.0
        %484 = vmatpush1.xpose.msra.mxu0 %v381
        %485 = vmatprep.subr.mxu0 0.0
        %486 = vmatpush1.xpose.msra.mxu0 %v382
        %487 = vmatprep.subr.mxu0 0.0
        %488 = vmatpush1.xpose.msra.mxu0 %v383
        %489 = vmatprep.subr.mxu0 0.0
        %490 = vmatpush1.xpose.msra.mxu0 %v384
        %491 = vmatprep.subr.mxu0 0.0
        %492 = vmatpush1.xpose.msra.mxu0 %v385
        %493 = vmatprep.subr.mxu0 0.0
        %494 = vmatpush1.xpose.msra.mxu0 %v386
        %495 = vmatprep.subr.mxu0 0.0
        %496 = vmatpush1.xpose.msra.mxu0 %v387
        %497 = vmatprep.subr.mxu0 0.0
        %498 = vmatpush1.xpose.msra.mxu0 %v388
        %499 = vmatprep.subr.mxu0 0.0
        %500 = vmatpush1.xpose.msra.mxu0 %v389
        %501 = vmatprep.subr.mxu0 0.0
        %502 = vmatpush1.xpose.msra.mxu0 %v390
        %503 = vmatprep.subr.mxu0 0.0
        %504 = vmatpush1.xpose.msra.mxu0 %v391
        %505 = vmatprep.subr.mxu0 0.0
        %506 = vmatpush1.xpose.msra.mxu0 %v392
        %507 = vmatprep.subr.mxu0 0.0
        %508 = vmatpush1.xpose.msra.mxu0 %v393
        %509 = vmatprep.subr.mxu0 0.0
        %510 = vmatpush1.xpose.msra.mxu0 %v394
        %511 = vmatprep.subr.mxu0 0.0
        %512 = vmatpush1.xpose.msra.mxu0 %v395
        %513 = vmatprep.subr.mxu0 0.0
        %514 = vmatpush1.xpose.msra.mxu0 %v396
        %515 = vmatprep.subr.mxu0 0.0
        %516 = vmatpush1.xpose.msra.mxu0 0.0
        %517 = vmatprep.subr.mxu0 0.0
        %518 = vmatpush1.xpose.msra.mxu0 0.0
        %519 = vmatprep.subr.mxu0 0.0
        %520 = vmatpush1.xpose.msra.mxu0 0.0
        %521 = vmatprep.subr.mxu0 0.0
        %522 = vmatpush1.xpose.msra.mxu0 0.0
        %523 = vmatprep.subr.mxu0 0.0
        %524 = vmatpush1.xpose.msra.mxu0 0.0
        %525 = vmatprep.subr.mxu0 0.0
        %526 = vmatpush1.xpose.msra.mxu0 0.0
        %527 = vmatprep.subr.mxu0 0.0
        %528 = vmatpush1.xpose.msra.mxu0 0.0
        %529 = vmatprep.subr.mxu0 0.0
        %530 = vmatpush1.xpose.msra.mxu0 0.0
        %531 = vmatprep.subr.mxu0 0.0
        %532 = vmatpush1.xpose.msra.mxu0 0.0
        %533 = vmatprep.subr.mxu0 0.0
        %534 = vmatpush1.xpose.msra.mxu0 0.0
        %535 = vmatprep.subr.mxu0 0.0
        %536 = vmatpush1.xpose.msra.mxu0 0.0
        %537 = vmatprep.subr.mxu0 0.0
        %538 = vmatpush1.xpose.msra.mxu0 0.0
        %539 = vmatprep.subr.mxu0 0.0
        %540 = vmatpush1.xpose.msra.mxu0 0.0
        %541 = vmatprep.subr.mxu0 0.0
        %542 = vmatpush1.xpose.msra.mxu0 0.0
        %543 = vmatprep.subr.mxu0 0.0
        %544 = vmatpush1.xpose.msra.mxu0 0.0
        %545 = vmatprep.subr.mxu0 0.0
        %546 = vmatpush1.xpose.msra.mxu0 0.0
        %547 = vmatprep.mubr.f32.mxu0 0.0
        %548 = vmatmul.mubr.f32.gmra.mrb[0].mxu0 %v480
        %v549 = vpop.f32.mrb[0].mxu0
        %v550 = vadd.f32 0.0, %v549
        %v551 = vpop.f32.mrb[0].mxu0
        %552 = vdwg.mxu0
        %v553 = vlaneseq
        %v554 = vand.u32 %v553, 127
        %vm555 = vcmp.lt.s32.totalorder %v554, 8
        %v556 = vsel %vm555, %v550, -3.4028235e+38
        %557 = vmax.xlane.f32.xlu0 %v556
        %v558 = vpop.xlane.xlu0 %557
        %v559 = vsub.f32 %v556, %v558
        %v560 = vmul.f32 %v559, 1.442695
        %v561 = vpow.pop %v560
        %562 = vadd.xlane.f32.xlu0 %v561
        %v563 = vpop.xlane.xlu0 %562
        %v564 = vrcp.pop %v563
        %v565 = vmul.f32 %v561, %v564
        %566 = vmatprep.subr.mxu0 0.0
        %567 = vmatpush1.msra.mxu0 %v381
        %568 = vmatprep.subr.mxu0 0.0
        %569 = vmatpush1.msra.mxu0 %v382
        %570 = vmatprep.subr.mxu0 0.0
        %571 = vmatpush1.msra.mxu0 %v383
        %572 = vmatprep.subr.mxu0 0.0
        %573 = vmatpush1.msra.mxu0 %v384
        %574 = vmatprep.subr.mxu0 0.0
        %575 = vmatpush1.msra.mxu0 %v385
        %576 = vmatprep.subr.mxu0 0.0
        %577 = vmatpush1.msra.mxu0 %v386
        %578 = vmatprep.subr.mxu0 0.0
        %579 = vmatpush1.msra.mxu0 %v387
        %580 = vmatprep.subr.mxu0 0.0
        %581 = vmatpush1.msra.mxu0 %v388
        %582 = vmatprep.subr.mxu0 0.0
        %583 = vmatpush1.msra.mxu0 %v389
        %584 = vmatprep.subr.mxu0 0.0
        %585 = vmatpush1.msra.mxu0 %v390
        %586 = vmatprep.subr.mxu0 0.0
        %587 = vmatpush1.msra.mxu0 %v391
        %588 = vmatprep.subr.mxu0 0.0
        %589 = vmatpush1.msra.mxu0 %v392
        %590 = vmatprep.subr.mxu0 0.0
        %591 = vmatpush1.msra.mxu0 %v393
        %592 = vmatprep.subr.mxu0 0.0
        %593 = vmatpush1.msra.mxu0 %v394
        %594 = vmatprep.subr.mxu0 0.0
        %595 = vmatpush1.msra.mxu0 %v395
        %596 = vmatprep.subr.mxu0 0.0
        %597 = vmatpush1.msra.mxu0 %v396
        %598 = vmatprep.subr.mxu0 0.0
        %599 = vmatpush1.msra.mxu0 0.0
        %600 = vmatprep.subr.mxu0 0.0
        %601 = vmatpush1.msra.mxu0 0.0
        %602 = vmatprep.subr.mxu0 0.0
        %603 = vmatpush1.msra.mxu0 0.0
        %604 = vmatprep.subr.mxu0 0.0
        %605 = vmatpush1.msra.mxu0 0.0
        %606 = vmatprep.subr.mxu0 0.0
        %607 = vmatpush1.msra.mxu0 0.0
        %608 = vmatprep.subr.mxu0 0.0
        %609 = vmatpush1.msra.mxu0 0.0
        %610 = vmatprep.subr.mxu0 0.0
        %611 = vmatpush1.msra.mxu0 0.0
        %612 = vmatprep.subr.mxu0 0.0
        %613 = vmatpush1.msra.mxu0 0.0
        %614 = vmatprep.subr.mxu0 0.0
        %615 = vmatpush1.msra.mxu0 0.0
        %616 = vmatprep.subr.mxu0 0.0
        %617 = vmatpush1.msra.mxu0 0.0
        %618 = vmatprep.subr.mxu0 0.0
        %619 = vmatpush1.msra.mxu0 0.0
        %620 = vmatprep.subr.mxu0 0.0
        %621 = vmatpush1.msra.mxu0 0.0
        %622 = vmatprep.subr.mxu0 0.0
        %623 = vmatpush1.msra.mxu0 0.0
        %624 = vmatprep.subr.mxu0 0.0
        %625 = vmatpush1.msra.mxu0 0.0
        %626 = vmatprep.subr.mxu0 0.0
        %627 = vmatpush1.msra.mxu0 0.0
        %628 = vmatprep.subr.mxu0 0.0
        %629 = vmatpush1.msra.mxu0 0.0
        %630 = vmatprep.mubr.f32.mxu0 0.0
        %631 = vmatmul.mubr.f32.gmra.mrb[0].mxu0 %v565
        %v632 = vpop.f32.mrb[0].mxu0
        %v633 = vadd.f32 0.0, %v632
        %v634 = vpop.f32.mrb[0].mxu0
        %635 = vdwg.mxu0
        %v636 = vld [vmem:[#allocation8] sm:$0xff]
        %v637 = vld [vmem:[#allocation8 + $0x8] sm:$0xff]
        %v638 = vld [vmem:[#allocation8 + $0x10] sm:$0xff]
        %v639 = vld [vmem:[#allocation8 + $0x18] sm:$0xff]
        %v640 = vld [vmem:[#allocation8 + $0x20] sm:$0xff]
        %v641 = vld [vmem:[#allocation8 + $0x28] sm:$0xff]
        %v642 = vld [vmem:[#allocation8 + $0x30] sm:$0xff]
        %v643 = vld [vmem:[#allocation8 + $0x38] sm:$0xff]
        %v644 = vld [vmem:[#allocation8 + $0x40] sm:$0xff]
        %v645 = vld [vmem:[#allocation8 + $0x48] sm:$0xff]
        %v646 = vld [vmem:[#allocation8 + $0x50] sm:$0xff]
        %v647 = vld [vmem:[#allocation8 + $0x58] sm:$0xff]
        %v648 = vld [vmem:[#allocation8 + $0x60] sm:$0xff]
        %v649 = vld [vmem:[#allocation8 + $0x68] sm:$0xff]
        %v650 = vld [vmem:[#allocation8 + $0x70] sm:$0xff]
        %v651 = vld [vmem:[#allocation8 + $0x78] sm:$0xff]
        %v652 = vld [vmem:[#allocation10] sm:$0xff]
        %v653 = vld [vmem:[#allocation10 + $0x8] sm:$0xff]
        %v654 = vld [vmem:[#allocation10 + $0x10] sm:$0xff]
        %v655 = vld [vmem:[#allocation10 + $0x18] sm:$0xff]
        %v656 = vld [vmem:[#allocation10 + $0x20] sm:$0xff]
        %v657 = vld [vmem:[#allocation10 + $0x28] sm:$0xff]
        %v658 = vld [vmem:[#allocation10 + $0x30] sm:$0xff]
        %v659 = vld [vmem:[#allocation10 + $0x38] sm:$0xff]
        %v660 = vld [vmem:[#allocation10 + $0x40] sm:$0xff]
        %v661 = vld [vmem:[#allocation10 + $0x48] sm:$0xff]
        %v662 = vld [vmem:[#allocation10 + $0x50] sm:$0xff]
        %v663 = vld [vmem:[#allocation10 + $0x58] sm:$0xff]
        %v664 = vld [vmem:[#allocation10 + $0x60] sm:$0xff]
        %v665 = vld [vmem:[#allocation10 + $0x68] sm:$0xff]
        %v666 = vld [vmem:[#allocation10 + $0x70] sm:$0xff]
        %v667 = vld [vmem:[#allocation10 + $0x78] sm:$0xff]
        %668 = vmatprep.subr.mxu0 0.0
        %669 = vmatpush1.msra.mxu0 %v652
        %670 = vmatprep.subr.mxu0 0.0
        %671 = vmatpush1.msra.mxu0 %v653
        %672 = vmatprep.subr.mxu0 0.0
        %673 = vmatpush1.msra.mxu0 %v654
        %674 = vmatprep.subr.mxu0 0.0
        %675 = vmatpush1.msra.mxu0 %v655
        %676 = vmatprep.subr.mxu0 0.0
        %677 = vmatpush1.msra.mxu0 %v656
        %678 = vmatprep.subr.mxu0 0.0
        %679 = vmatpush1.msra.mxu0 %v657
        %680 = vmatprep.subr.mxu0 0.0
        %681 = vmatpush1.msra.mxu0 %v658
        %682 = vmatprep.subr.mxu0 0.0
        %683 = vmatpush1.msra.mxu0 %v659
        %684 = vmatprep.subr.mxu0 0.0
        %685 = vmatpush1.msra.mxu0 %v660
        %686 = vmatprep.subr.mxu0 0.0
        %687 = vmatpush1.msra.mxu0 %v661
        %688 = vmatprep.subr.mxu0 0.0
        %689 = vmatpush1.msra.mxu0 %v662
        %690 = vmatprep.subr.mxu0 0.0
        %691 = vmatpush1.msra.mxu0 %v663
        %692 = vmatprep.subr.mxu0 0.0
        %693 = vmatpush1.msra.mxu0 %v664
        %694 = vmatprep.subr.mxu0 0.0
        %695 = vmatpush1.msra.mxu0 %v665
        %696 = vmatprep.subr.mxu0 0.0
        %697 = vmatpush1.msra.mxu0 %v666
        %698 = vmatprep.subr.mxu0 0.0
        %699 = vmatpush1.msra.mxu0 %v667
        %700 = vmatprep.subr.mxu0 0.0
        %701 = vmatpush1.msra.mxu0 0.0
        %702 = vmatprep.subr.mxu0 0.0
        %703 = vmatpush1.msra.mxu0 0.0
        %704 = vmatprep.subr.mxu0 0.0
        %705 = vmatpush1.msra.mxu0 0.0
        %706 = vmatprep.subr.mxu0 0.0
        %707 = vmatpush1.msra.mxu0 0.0
        %708 = vmatprep.subr.mxu0 0.0
        %709 = vmatpush1.msra.mxu0 0.0
        %710 = vmatprep.subr.mxu0 0.0
        %711 = vmatpush1.msra.mxu0 0.0
        %712 = vmatprep.subr.mxu0 0.0
        %713 = vmatpush1.msra.mxu0 0.0
        %714 = vmatprep.subr.mxu0 0.0
        %715 = vmatpush1.msra.mxu0 0.0
        %716 = vmatprep.subr.mxu0 0.0
        %717 = vmatpush1.msra.mxu0 0.0
        %718 = vmatprep.subr.mxu0 0.0
        %719 = vmatpush1.msra.mxu0 0.0
        %720 = vmatprep.subr.mxu0 0.0
        %721 = vmatpush1.msra.mxu0 0.0
        %722 = vmatprep.subr.mxu0 0.0
        %723 = vmatpush1.msra.mxu0 0.0
        %724 = vmatprep.subr.mxu0 0.0
        %725 = vmatpush1.msra.mxu0 0.0
        %726 = vmatprep.subr.mxu0 0.0
        %727 = vmatpush1.msra.mxu0 0.0
        %728 = vmatprep.subr.mxu0 0.0
        %729 = vmatpush1.msra.mxu0 0.0
        %730 = vmatprep.subr.mxu0 0.0
        %731 = vmatpush1.msra.mxu0 0.0
        %732 = vmatprep.mubr.f32.mxu0 0.0
        %733 = vmatmul.mubr.f32.gmra.mrb[0].mxu0 %v480
        %v734 = vpop.f32.mrb[0].mxu0
        %v735 = vadd.f32 0.0, %v734
        %v736 = vpop.f32.mrb[0].mxu0
        %737 = vdwg.mxu0
        %738 = vmatprep.subr.mxu0 0.0
        %739 = vmatpush1.msra.mxu0 %v636
        %740 = vmatprep.subr.mxu0 0.0
        %741 = vmatpush1.msra.mxu0 %v637
        %742 = vmatprep.subr.mxu0 0.0
        %743 = vmatpush1.msra.mxu0 %v638
        %744 = vmatprep.subr.mxu0 0.0
        %745 = vmatpush1.msra.mxu0 %v639
        %746 = vmatprep.subr.mxu0 0.0
        %747 = vmatpush1.msra.mxu0 %v640
        %748 = vmatprep.subr.mxu0 0.0
        %749 = vmatpush1.msra.mxu0 %v641
        %750 = vmatprep.subr.mxu0 0.0
        %751 = vmatpush1.msra.mxu0 %v642
        %752 = vmatprep.subr.mxu0 0.0
        %753 = vmatpush1.msra.mxu0 %v643
        %754 = vmatprep.subr.mxu0 0.0
        %755 = vmatpush1.msra.mxu0 %v644
        %756 = vmatprep.subr.mxu0 0.0
        %757 = vmatpush1.msra.mxu0 %v645
        %758 = vmatprep.subr.mxu0 0.0
        %759 = vmatpush1.msra.mxu0 %v646
        %760 = vmatprep.subr.mxu0 0.0
        %761 = vmatpush1.msra.mxu0 %v647
        %762 = vmatprep.subr.mxu0 0.0
        %763 = vmatpush1.msra.mxu0 %v648
        %764 = vmatprep.subr.mxu0 0.0
        %765 = vmatpush1.msra.mxu0 %v649
        %766 = vmatprep.subr.mxu0 0.0
        %767 = vmatpush1.msra.mxu0 %v650
        %768 = vmatprep.subr.mxu0 0.0
        %769 = vmatpush1.msra.mxu0 %v651
        %770 = vmatprep.subr.mxu0 0.0
        %771 = vmatpush1.msra.mxu0 0.0
        %772 = vmatprep.subr.mxu0 0.0
        %773 = vmatpush1.msra.mxu0 0.0
        %774 = vmatprep.subr.mxu0 0.0
        %775 = vmatpush1.msra.mxu0 0.0
        %776 = vmatprep.subr.mxu0 0.0
        %777 = vmatpush1.msra.mxu0 0.0
        %778 = vmatprep.subr.mxu0 0.0
        %779 = vmatpush1.msra.mxu0 0.0
        %780 = vmatprep.subr.mxu0 0.0
        %781 = vmatpush1.msra.mxu0 0.0
        %782 = vmatprep.subr.mxu0 0.0
        %783 = vmatpush1.msra.mxu0 0.0
        %784 = vmatprep.subr.mxu0 0.0
        %785 = vmatpush1.msra.mxu0 0.0
        %786 = vmatprep.subr.mxu0 0.0
        %787 = vmatpush1.msra.mxu0 0.0
        %788 = vmatprep.subr.mxu0 0.0
        %789 = vmatpush1.msra.mxu0 0.0
        %790 = vmatprep.subr.mxu0 0.0
        %791 = vmatpush1.msra.mxu0 0.0
        %792 = vmatprep.subr.mxu0 0.0
        %793 = vmatpush1.msra.mxu0 0.0
        %794 = vmatprep.subr.mxu0 0.0
        %795 = vmatpush1.msra.mxu0 0.0
        %796 = vmatprep.subr.mxu0 0.0
        %797 = vmatpush1.msra.mxu0 0.0
        %798 = vmatprep.subr.mxu0 0.0
        %799 = vmatpush1.msra.mxu0 0.0
        %800 = vmatprep.subr.mxu0 0.0
        %801 = vmatpush1.msra.mxu0 0.0
        %802 = vmatprep.mubr.f32.mxu0 0.0
        %803 = vmatmul.mubr.f32.gmra.mrb[0].mxu0 %v633
        %v804 = vpop.f32.mrb[0].mxu0
        %v805 = vadd.f32 %v735, %v804
        %v806 = vpop.f32.mrb[0].mxu0
        %807 = vdwg.mxu0
        %v808 = vtanh.pop %v805
        %809 = vst [vmem:[%s372] sm:$0xff] %v808
        %810 = vst [vmem:[%s379] sm:$0xff] %v565
        %s811 = sand.u32 %s170, 1
        %s812 = scalar_lea.sflag [#allocation4], %s811
        %s813 = sand.u32 %s170, 1
        %s814 = smul.addr %s813, 8
        %s815 = scalar_lea.vmem [#allocation11], %s814
        %s816 = sand.u32 %s198, 1
        %s817 = scalar_lea.sflag [#allocation13], %s816
        %s818 = sand.u32 %s198, 1
        %s819 = smul.addr %s818, 8
        %s820 = scalar_lea.vmem [#allocation12], %s819
        // Predicated region
        $region61: #{tpu_custom_call.1} parent=39 // pred_check
          %p821 = pneg %p180
        $region62: #{tpu_custom_call.1} parent=39 // pred_check_branch
          %823 = sbr.rel (%p821) target = $region64
        $region63: #{tpu_custom_call.1} parent=39 // pred_region
          %s825 = ssub.s32 128, 128
          %826 = vsyncadd %s812, %s825
          %s827 = sadd.s32 %s36, %s35
          %s828 = smul.addr %s827, 128
          %s829 = scalar_lea.hbm %s5, %s828
          %s831 = sshll.u32 %s815, 4
          %s832 = int_to_ptr.vmem [resolvable:$true] %s831
          %834 = dma.vmem_to_hbm [thread:$0]  %s832, 128, %s829, %s812
        $region64: #{tpu_custom_call.1} parent=39 // pred_fallthru
          _
        // Predicated region
        $region65: #{tpu_custom_call.1} parent=39 // pred_check
          %p835 = pneg %p208
        $region66: #{tpu_custom_call.1} parent=39 // pred_check_branch
          %837 = sbr.rel (%p835) target = $region68
        $region67: #{tpu_custom_call.1} parent=39 // pred_region
          %s839 = ssub.s32 128, 128
          %840 = vsyncadd %s817, %s839
          %s841 = sadd.s32 %s36, %s35
          %s842 = smul.addr %s841, 128
          %s843 = scalar_lea.hbm %s6, %s842
          %s845 = sshll.u32 %s820, 4
          %s846 = int_to_ptr.vmem [resolvable:$true] %s845
          %848 = dma.vmem_to_hbm [thread:$0]  %s846, 128, %s843, %s817
        $region68: #{tpu_custom_call.1} parent=39 // pred_fallthru
          _
      $region40: #{tpu_custom_call.1} parent=5 // pred_fallthru
        _
      %p849 = scmp.le.s32.totalorder 2, %s26
      // Predicated region
      $region69: #{tpu_custom_call.1} parent=5 // pred_check
        %p850 = pneg %p849
      $region70: #{tpu_custom_call.1} parent=5 // pred_check_branch
        %852 = sbr.rel (%p850) target = $region72
      $region71: #{tpu_custom_call.1} parent=5 // pred_region
        %s853 = ssub.s32 %s26, 2
        // Predicated region
        $region73: #{tpu_custom_call.1} parent=71 // pred_check
          %p854 = pneg %p186
        $region74: #{tpu_custom_call.1} parent=71 // pred_check_branch
          %856 = sbr.rel (%p854) target = $region76
        $region75: #{tpu_custom_call.1} parent=71 // pred_region
          %s857 = sand.u32 %s171, 1
          %s858 = scalar_lea.sflag [#allocation4], %s857
          %s859 = sand.u32 %s171, 1
          %s860 = smul.addr %s859, 8
          %s861 = scalar_lea.vmem [#allocation11], %s860
          %862 = dma.done %s858, 128
        $region76: #{tpu_custom_call.1} parent=71 // pred_fallthru
          _
        // Predicated region
        $region77: #{tpu_custom_call.1} parent=71 // pred_check
          %p863 = pneg %p214
        $region78: #{tpu_custom_call.1} parent=71 // pred_check_branch
          %865 = sbr.rel (%p863) target = $region80
        $region79: #{tpu_custom_call.1} parent=71 // pred_region
          %s866 = sand.u32 %s199, 1
          %s867 = scalar_lea.sflag [#allocation13], %s866
          %s868 = sand.u32 %s199, 1
          %s869 = smul.addr %s868, 8
          %s870 = scalar_lea.vmem [#allocation12], %s869
          %871 = dma.done %s867, 128
        $region80: #{tpu_custom_call.1} parent=71 // pred_fallthru
          _
      $region72: #{tpu_custom_call.1} parent=5 // pred_fallthru
        _
    $region6: #{tpu_custom_call.1} parent=1 // loop_footer
      %s30 = sadd.s32 1, %s26
    $region7: #{tpu_custom_call.1} parent=1 // loop_footer_branch
      %25 = sbr.rel target = $region3
    $region8: #{tpu_custom_call.1} parent=1 // loop_exit
      _
    %872 = vsyncpa [#allocation3], 1
    %s873 = scalar_lea.sflag [#allocation3], 1
    %874 = vsyncpa %s873, 1
    %875 = vsyncpa [#allocation6], 1
    %s876 = scalar_lea.sflag [#allocation6], 1
    %877 = vsyncpa %s876, 1
    %878 = vsyncpa [#allocation9], 1
    %879 = vsyncpa [#allocation4], 1
    %s880 = scalar_lea.sflag [#allocation4], 1
    %881 = vsyncpa %s880, 1
    %882 = vsyncpa [#allocation13], 1
    %s883 = scalar_lea.sflag [#allocation13], 1
    %884 = vsyncpa %s883, 1

</llo_original>
